<compile_context>
chip_gen: v7x
topology: tpu7x:2x2x1
jax: 0.10.0
libtpu: 0.0.40
codegen_flags: <defaults>
</compile_context>

<pallas_src>
import math

import jax
import jax.numpy as jnp
from jax import lax
from jax.experimental import pallas as pl
from jax.experimental.pallas import tpu as pltpu

_LN_EPS = 1e-5  # torch nn.LayerNorm default


def _tpu_tuning():
    """Generation-dependent (block_rows, vmem_limit_bytes)."""
    try:
        kind = jax.devices()[0].device_kind.lower()
    except Exception:
        kind = ""
    if ("v5" in kind) or ("v6" in kind):          # 128 MiB VMEM per core
        return 1024, 96 * 1024 * 1024
    # v7x (64 MiB VMEM) and anything unknown: conservative, known-good budget
    return 512, 48 * 1024 * 1024


# ---------------------------------------------------------------------------
# Kernel 1: fused (x + pos_emb) and LayerNorm(norm1) — two outputs.
# ---------------------------------------------------------------------------
def _posemb_ln_kernel(x_ref, p_ref, g_ref, b_ref, res_ref, u_ref):
    # residual = x + pos   (pe_dropout p=0 -> identity)
    xr = x_ref[...].astype(jnp.float32) + p_ref[...].astype(jnp.float32)
    res_ref[...] = xr.astype(res_ref.dtype)
    # norm1 over the channel (last) dim
    mean = jnp.mean(xr, axis=-1, keepdims=True)
    xc = xr - mean
    var = jnp.mean(xc * xc, axis=-1, keepdims=True)
    u_ref[...] = (xc * lax.rsqrt(var + _LN_EPS) * g_ref[...] + b_ref[...]).astype(u_ref.dtype)


def posemb_layernorm_pallas(x, pos, gamma, beta, *, block_n=None):
    """Returns (residual, LN(residual)) with residual = x + pos.  x: (B,N,C), pos: (1,N,C)."""
    B, N, C = x.shape
    default_n, vmem_limit = _tpu_tuning()
    tn = max(8, min(block_n or default_n, N))
    grid = (B, pl.cdiv(N, tn))

    res, u = pl.pallas_call(
        _posemb_ln_kernel,
        out_shape=(jax.ShapeDtypeStruct((B, N, C), x.dtype),
                   jax.ShapeDtypeStruct((B, N, C), x.dtype)),
        grid_spec=pltpu.PrefetchScalarGridSpec(
            num_scalar_prefetch=0,
            grid=grid,
            in_specs=[
                pl.BlockSpec((None, tn, C), lambda b, j: (b, j, 0)),   # x tile (pipelined)
                pl.BlockSpec((None, tn, C), lambda b, j: (0, j, 0)),   # pos tile (shared over B)
                pl.BlockSpec((1, C), lambda b, j: (0, 0)),             # gamma (resident)
                pl.BlockSpec((1, C), lambda b, j: (0, 0)),             # beta  (resident)
            ],
            out_specs=(pl.BlockSpec((None, tn, C), lambda b, j: (b, j, 0)),
                       pl.BlockSpec((None, tn, C), lambda b, j: (b, j, 0))),
        ),
        compiler_params=pltpu.CompilerParams(
            dimension_semantics=("parallel", "parallel"),
            vmem_limit_bytes=vmem_limit,
        ),
    )(x, pos,
      gamma.reshape(1, C).astype(jnp.float32),
      beta.reshape(1, C).astype(jnp.float32))
    return res, u


# ---------------------------------------------------------------------------
# Kernel 2: fused norm2 + fc1 + GELU + fc2 + residual-add + final LayerNorm.
# ---------------------------------------------------------------------------
def _ln_mlp_res_ln_kernel(f_ref, r_ref, g2_ref, bt2_ref,
                          w1_ref, b1_ref, w2_ref, b2_ref,
                          g3_ref, bt3_ref, o_ref):
    # norm2 (LayerNorm over C) in f32
    f = f_ref[...].astype(jnp.float32)                       # (tm, C)
    mu = jnp.mean(f, axis=-1, keepdims=True)
    fc = f - mu
    var = jnp.mean(fc * fc, axis=-1, keepdims=True)
    v = fc * lax.rsqrt(var + _LN_EPS) * g2_ref[...] + bt2_ref[...]

    # fc1: MXU matmul, f32 accumulate; cast to weight dtype at the MXU boundary
    h = jnp.dot(v.astype(w1_ref.dtype), w1_ref[...],
                preferred_element_type=jnp.float32) + b1_ref[...]
    # tanh GELU -> transcendental lands on the EUP slot (VALU was the binding slot at C=128)
    h = jax.nn.gelu(h, approximate=True)

    # dropout(p=0) is identity; fc2
    y = jnp.dot(h.astype(w2_ref.dtype), w2_ref[...],
                preferred_element_type=jnp.float32) + b2_ref[...]

    # residual add (drop_path p=0 -> identity), then the block's final LayerNorm (fused)
    y = r_ref[...].astype(jnp.float32) + y
    mu2 = jnp.mean(y, axis=-1, keepdims=True)
    yc = y - mu2
    var2 = jnp.mean(yc * yc, axis=-1, keepdims=True)
    z = yc * lax.rsqrt(var2 + _LN_EPS) * g3_ref[...] + bt3_ref[...]
    o_ref[...] = z.astype(o_ref.dtype)


def ln_mlp_residual_ln_pallas(f, resid, g2, b2, w1, b1, w2, b2f, g3, b3, *, block_m=None):
    """out = LN3(resid + fc2(gelu(fc1(LN2(f))))), tiled over tokens (last dim = C)."""
    orig_shape = f.shape
    c = orig_shape[-1]
    hdim = w1.shape[1]
    f2d = f.reshape(-1, c)
    r2d = resid.reshape(-1, c)
    m = f2d.shape[0]
    default_m, vmem_limit = _tpu_tuning()
    tm = max(8, min(block_m or default_m, m))   # >= 256 whenever m allows (MXU M-fill)
    grid = (pl.cdiv(m, tm),)

    wbytes = w1.dtype.itemsize
    xbytes = f.dtype.itemsize
    cost = pl.CostEstimate(
        flops=4 * m * c * hdim + 16 * m * c,
        transcendentals=m * hdim,                               # one tanh per hidden activation
        bytes_accessed=(3 * m * c) * xbytes
                       + (2 * c * hdim + hdim + c) * wbytes
                       + 4 * c * 4,
    )

    out = pl.pallas_call(
        _ln_mlp_res_ln_kernel,
        out_shape=jax.ShapeDtypeStruct((m, c), f.dtype),
        grid_spec=pltpu.PrefetchScalarGridSpec(
            num_scalar_prefetch=0,
            grid=grid,
            in_specs=[
                pl.BlockSpec((tm, c), lambda i: (i, 0)),     # filter-output tile (pipelined)
                pl.BlockSpec((tm, c), lambda i: (i, 0)),     # residual tile (pipelined)
                pl.BlockSpec((1, c), lambda i: (0, 0)),      # norm2 gamma (resident)
                pl.BlockSpec((1, c), lambda i: (0, 0)),      # norm2 beta
                pl.BlockSpec((c, hdim), lambda i: (0, 0)),   # fc1 weight (resident)
                pl.BlockSpec((1, hdim), lambda i: (0, 0)),   # fc1 bias
                pl.BlockSpec((hdim, c), lambda i: (0, 0)),   # fc2 weight (resident)
                pl.BlockSpec((1, c), lambda i: (0, 0)),      # fc2 bias
                pl.BlockSpec((1, c), lambda i: (0, 0)),      # final-norm gamma (resident)
                pl.BlockSpec((1, c), lambda i: (0, 0)),      # final-norm beta
            ],
            out_specs=pl.BlockSpec((tm, c), lambda i: (i, 0)),
        ),
        compiler_params=pltpu.CompilerParams(
            dimension_semantics=("parallel",),               # v7x: shard M over both TCs
            vmem_limit_bytes=vmem_limit,
        ),
        cost_estimate=cost,
    )(f2d, r2d,
      g2.reshape(1, c).astype(jnp.float32), b2.reshape(1, c).astype(jnp.float32),
      w1, b1.reshape(1, hdim), w2, b2f.reshape(1, c),
      g3.reshape(1, c).astype(jnp.float32), b3.reshape(1, c).astype(jnp.float32))
    return out.reshape(orig_shape)


# ---------------------------------------------------------------------------
# GlobalFilter (spectral mixing) — plain JAX.
# ---------------------------------------------------------------------------
def global_filter(x_tokens, complex_weight, a, b):
    # TODO(synk): no Pallas FFT primitive; rfft2/irfft2 use XLA's FFT op (C-minor layout
    # forces XLA transposes around the FFT — unavoidable without changing the FFT layout).
    B, N, C = x_tokens.shape
    x = x_tokens.reshape(B, a, b, C).astype(jnp.float32)
    xf = jnp.fft.rfft2(x, axes=(1, 2), norm="ortho")
    w = complex_weight[..., 0] + 1j * complex_weight[..., 1]  # (a, b//2+1, C)
    xf = xf * w
    y = jnp.fft.irfft2(xf, s=(a, b), axes=(1, 2), norm="ortho")
    return y.reshape(B, N, C)


# ---------------------------------------------------------------------------
# GF_block forward (matches the PyTorch module with dropout / drop_path p=0).
# ---------------------------------------------------------------------------
def gf_block_forward(x, params):
    B, C, h, w = x.shape
    N = h * w
    # (B, C, h, w) -> (B, N, C); inverse transpose at the end is required by the
    # module's NCHW output contract.
    xt = jnp.transpose(x, (0, 2, 3, 1)).reshape(B, N, C)
    # fused: pos-emb add (+pe_dropout p=0) + norm1 -> (residual, LN) in one HBM pass
    xt_res, u = posemb_layernorm_pallas(xt, params["pos_emb"],
                                        params["norm1_g"], params["norm1_b"])
    # GlobalFilter (spatial size passed explicitly; equals torch's a=b=sqrt(N) when h==w)
    f = global_filter(u, params["filter_w"], h, w)
    # fused: norm2 + fc1 + GELU + fc2 + residual + FINAL LayerNorm
    z = ln_mlp_residual_ln_pallas(f, xt_res,
                                  params["norm2_g"], params["norm2_b"],
                                  params["fc1_w"], params["fc1_b"],
                                  params["fc2_w"], params["fc2_b"],
                                  params["norm_g"], params["norm_b"])
    # reshape_output: (B, N, C) -> (B, h, w, C) -> (B, C, h, w)
    return jnp.transpose(z.reshape(B, h, w, C), (0, 3, 1, 2))


def init_gf_block_params(key, in_channel, h, w, mlp_ratio=4.0, dtype=jnp.float32):
    """Matches a torch GF_block layout. pos_emb is zeros in torch; a small random value is
    used here so the fused pos-add path is actually exercised by the parity check.
    For production, fc1_w/fc2_w may be passed as bf16 — the kernel casts at the MXU boundary."""
    C = in_channel
    N = h * w
    hidden = int(C * mlp_ratio)
    k1, k2, k3, k4, k5, k6 = jax.random.split(key, 6)
    lim1 = 1.0 / math.sqrt(C)
    lim2 = 1.0 / math.sqrt(hidden)
    return dict(
        pos_emb=0.02 * jax.random.normal(k6, (1, N, C), dtype),
        norm1_g=jnp.ones((C,), dtype), norm1_b=jnp.zeros((C,), dtype),
        filter_w=0.02 * jax.random.normal(k1, (h, h // 2 + 1, C, 2), jnp.float32),
        norm2_g=jnp.ones((C,), dtype), norm2_b=jnp.zeros((C,), dtype),
        # Linear weights stored as (in, out) for the kernel's x @ W convention
        fc1_w=jax.random.uniform(k2, (C, hidden), dtype, -lim1, lim1),
        fc1_b=jax.random.uniform(k3, (hidden,), dtype, -lim1, lim1),
        fc2_w=jax.random.uniform(k4, (hidden, C), dtype, -lim2, lim2),
        fc2_b=jax.random.uniform(k5, (C,), dtype, -lim2, lim2),
        norm_g=jnp.ones((C,), dtype), norm_b=jnp.zeros((C,), dtype),
    )


# ---------------------------------------------------------------------------
# Pure-JAX reference (torch-parity: exact-erf GELU).
# ---------------------------------------------------------------------------
def gf_block_reference(x, params):
    B, C, h, w = x.shape
    N = h * w
    xt = jnp.transpose(x, (0, 2, 3, 1)).reshape(B, N, C) + params["pos_emb"]

    def ln(t, g, b):
        t32 = t.astype(jnp.float32)
        mu = jnp.mean(t32, axis=-1, keepdims=True)
        var = jnp.mean((t32 - mu) ** 2, axis=-1, keepdims=True)
        return (t32 - mu) / jnp.sqrt(var + _LN_EPS) * g + b

    u = ln(xt, params["norm1_g"], params["norm1_b"])
    f = global_filter(u, params["filter_w"], h, w)
    v = ln(f, params["norm2_g"], params["norm2_b"])
    hid = jax.nn.gelu(v @ params["fc1_w"] + params["fc1_b"], approximate=False)
    y = xt + (hid @ params["fc2_w"] + params["fc2_b"])
    z = ln(y, params["norm_g"], params["norm_b"])
    return jnp.transpose(z.reshape(B, h, w, C), (0, 3, 1, 2))


if __name__ == "__main__":
    key = jax.random.PRNGKey(0)
    kx, kp = jax.random.split(key)

    # TPU-friendly small shapes: C multiple of 128 (lane-dense stores), h == w so the
    # GlobalFilter weight matches, M = B*h*w = 512 tokens.
    B, C, H, W = 2, 128, 16, 16
    x = jax.random.normal(kx, (B, C, H, W), dtype=jnp.float32)
    params = init_gf_block_params(kp, C, H, W, mlp_ratio=4.0)

    y = gf_block_forward(x, params)
    y = jax.block_until_ready(y)

    ref = gf_block_reference(x, params)
    assert y.shape == (B, C, H, W)
    assert jnp.allclose(y, ref, atol=2e-3, rtol=2e-3), "mismatch vs reference"

    print("KERNEL_OK")
</pallas_src>

<mosaic_0001>
module attributes {stable_mosaic.version = 11 : i64} {
  func.func @_posemb_ln_kernel(%arg0: i32, %arg1: i32, %arg2: memref<1x256x128xf32, #tpu.memory_space<vmem>>, %arg3: memref<1x256x128xf32, #tpu.memory_space<vmem>>, %arg4: memref<1x128xf32, #tpu.memory_space<vmem>>, %arg5: memref<1x128xf32, #tpu.memory_space<vmem>>, %arg6: memref<1x256x128xf32, #tpu.memory_space<vmem>>, %arg7: memref<1x256x128xf32, #tpu.memory_space<vmem>>) attributes {dimension_semantics = [#tpu.dimension_semantics<parallel>, #tpu.dimension_semantics<parallel>], iteration_bounds = array<i64: 2, 1>, scalar_prefetch = 0 : i64, scratch_operands = 0 : i64, tpu.core_type = #tpu.core_type<tc>, window_params = [{transform_indices = @transform_0, window_bounds = array<i64: 1, 256, 128>}, {transform_indices = @transform_1, window_bounds = array<i64: 1, 256, 128>}, {pipeline_mode = #tpu.pipeline_mode<synchronous>, transform_indices = @transform_2, window_bounds = array<i64: 1, 128>}, {pipeline_mode = #tpu.pipeline_mode<synchronous>, transform_indices = @transform_3, window_bounds = array<i64: 1, 128>}, {transform_indices = @transform_4, window_bounds = array<i64: 1, 256, 128>}, {transform_indices = @transform_5, window_bounds = array<i64: 1, 256, 128>}]} {
    %c0 = arith.constant 0 : index
    %c0_0 = arith.constant 0 : index
    %c0_1 = arith.constant 0 : index
    %0 = vector.load %arg2[%c0, %c0_0, %c0_1] : memref<1x256x128xf32, #tpu.memory_space<vmem>>, vector<1x256x128xf32>
    %1 = vector.shape_cast %0 : vector<1x256x128xf32> to vector<256x128xf32>
    %c0_2 = arith.constant 0 : index
    %c0_3 = arith.constant 0 : index
    %c0_4 = arith.constant 0 : index
    %2 = vector.load %arg3[%c0_2, %c0_3, %c0_4] : memref<1x256x128xf32, #tpu.memory_space<vmem>>, vector<1x256x128xf32>
    %3 = vector.shape_cast %2 : vector<1x256x128xf32> to vector<256x128xf32>
    %4 = arith.addf %1, %3 : vector<256x128xf32>
    %c0_5 = arith.constant 0 : index
    %c0_6 = arith.constant 0 : index
    %c0_7 = arith.constant 0 : index
    %5 = vector.load %arg6[%c0_5, %c0_6, %c0_7] : memref<1x256x128xf32, #tpu.memory_space<vmem>>, vector<1x256x128xf32>
    %6 = vector.shape_cast %5 : vector<1x256x128xf32> to vector<256x128xf32>
    %7 = vector.shape_cast %4 : vector<256x128xf32> to vector<1x256x128xf32>
    tpu.vector_store %arg6[%c0_5, %c0_6, %c0_7], %7 {strides = array<i32>} : memref<1x256x128xf32, #tpu.memory_space<vmem>>, vector<1x256x128xf32>,
    %cst = arith.constant dense<0.000000e+00> : vector<256xf32>
    %8 = vector.multi_reduction <add>, %4, %cst [1] : vector<256x128xf32> to vector<256xf32>
    %9 = vector.shape_cast %8 : vector<256xf32> to vector<256x1xf32>
    %cst_8 = arith.constant 1.280000e+02 : f32
    %10 = vector.broadcast %cst_8 : f32 to vector<256x1xf32>
    %11 = arith.divf %9, %10 : vector<256x1xf32>
    %12 = vector.broadcast %11 : vector<256x1xf32> to vector<256x128xf32>
    %13 = arith.subf %4, %12 : vector<256x128xf32>
    %14 = arith.mulf %13, %13 : vector<256x128xf32>
    %cst_9 = arith.constant dense<0.000000e+00> : vector<256xf32>
    %15 = vector.multi_reduction <add>, %14, %cst_9 [1] : vector<256x128xf32> to vector<256xf32>
    %16 = vector.shape_cast %15 : vector<256xf32> to vector<256x1xf32>
    %cst_10 = arith.constant 1.280000e+02 : f32
    %17 = vector.broadcast %cst_10 : f32 to vector<256x1xf32>
    %18 = arith.divf %16, %17 : vector<256x1xf32>
    %cst_11 = arith.constant 9.99999974E-6 : f32
    %19 = vector.broadcast %cst_11 : f32 to vector<256x1xf32>
    %20 = arith.addf %18, %19 : vector<256x1xf32>
    %21 = math.rsqrt %20 : vector<256x1xf32>
    %22 = vector.broadcast %21 : vector<256x1xf32> to vector<256x128xf32>
    %23 = arith.mulf %13, %22 : vector<256x128xf32>
    %c0_12 = arith.constant 0 : index
    %c0_13 = arith.constant 0 : index
    %24 = vector.load %arg4[%c0_12, %c0_13] : memref<1x128xf32, #tpu.memory_space<vmem>>, vector<1x128xf32>
    %25 = vector.broadcast %24 : vector<1x128xf32> to vector<256x128xf32>
    %26 = arith.mulf %23, %25 : vector<256x128xf32>
    %c0_14 = arith.constant 0 : index
    %c0_15 = arith.constant 0 : index
    %27 = vector.load %arg5[%c0_14, %c0_15] : memref<1x128xf32, #tpu.memory_space<vmem>>, vector<1x128xf32>
    %28 = vector.broadcast %27 : vector<1x128xf32> to vector<256x128xf32>
    %29 = arith.addf %26, %28 : vector<256x128xf32>
    %c0_16 = arith.constant 0 : index
    %c0_17 = arith.constant 0 : index
    %c0_18 = arith.constant 0 : index
    %30 = vector.load %arg7[%c0_16, %c0_17, %c0_18] : memref<1x256x128xf32, #tpu.memory_space<vmem>>, vector<1x256x128xf32>
    %31 = vector.shape_cast %30 : vector<1x256x128xf32> to vector<256x128xf32>
    %32 = vector.shape_cast %29 : vector<256x128xf32> to vector<1x256x128xf32>
    tpu.vector_store %arg7[%c0_16, %c0_17, %c0_18], %32 {strides = array<i32>} : memref<1x256x128xf32, #tpu.memory_space<vmem>>, vector<1x256x128xf32>,
    return
  }
  func.func @transform_0(%arg0: i32, %arg1: i32) -> (i32, i32, i32) {
    %c0_i32 = arith.constant 0 : i32
    %c0_i32_0 = arith.constant 0 : i32
    return %arg0, %arg1, %c0_i32 : i32, i32, i32
  }
  func.func @transform_1(%arg0: i32, %arg1: i32) -> (i32, i32, i32) {
    %c0_i32 = arith.constant 0 : i32
    %c0_i32_0 = arith.constant 0 : i32
    %c0_i32_1 = arith.constant 0 : i32
    return %c0_i32, %arg1, %c0_i32_0 : i32, i32, i32
  }
  func.func @transform_2(%arg0: i32, %arg1: i32) -> (i32, i32) {
    %c0_i32 = arith.constant 0 : i32
    %c0_i32_0 = arith.constant 0 : i32
    %c0_i32_1 = arith.constant 0 : i32
    return %c0_i32, %c0_i32_0 : i32, i32
  }
  func.func @transform_3(%arg0: i32, %arg1: i32) -> (i32, i32) {
    %c0_i32 = arith.constant 0 : i32
    %c0_i32_0 = arith.constant 0 : i32
    %c0_i32_1 = arith.constant 0 : i32
    return %c0_i32, %c0_i32_0 : i32, i32
  }
  func.func @transform_4(%arg0: i32, %arg1: i32) -> (i32, i32, i32) {
    %c0_i32 = arith.constant 0 : i32
    %c0_i32_0 = arith.constant 0 : i32
    return %arg0, %arg1, %c0_i32 : i32, i32, i32
  }
  func.func @transform_5(%arg0: i32, %arg1: i32) -> (i32, i32, i32) {
    %c0_i32 = arith.constant 0 : i32
    %c0_i32_0 = arith.constant 0 : i32
    return %arg0, %arg1, %c0_i32 : i32, i32, i32
  }
}

</mosaic_0001>

<llo_original>
// kernel: tpu_custom_call.1
$region0: #{tpu_custom_call.1}
  #allocation0 [shape = 'u32[]', space=smem, size = 0x4, offset = 0x4, fixed_abs, tag = 'smem constant byte address 0x4 - core index']
  #allocation1 [shape = 'u32[144,128]{1,0:T(1,128)}', space=vmem, size = 0x12000, scoped, tag = 'internal scratch']
  %s0 = inlined_call_operand.hbm [shape: f32[2,256,128], index: 0, kind: input, shape index: {}]
  %s1 = inlined_call_operand.hbm [shape: f32[1,256,128], index: 1, kind: input, shape index: {}]
  %s2 = inlined_call_operand.vmem [shape: f32[1,128], index: 2, kind: input, shape index: {}]
  %s3 = inlined_call_operand.vmem [shape: f32[1,128], index: 3, kind: input, shape index: {}]
  %s4 = inlined_call_operand.hbm [shape: f32[2,256,128], index: 4, kind: output, shape index: {0}]
  %s5 = inlined_call_operand.hbm [shape: f32[2,256,128], index: 5, kind: output, shape index: {1}]
  %6 = xla_tuple %s4, %s5
  %s7 = sld [smem:[#allocation0]]
  $region65: #{tpu_custom_call.1} parent=0
    _
  %s9 = ssub.s32 1, %s7
  %s10 = scalar_select 0, %s9, %s7
  $region1: #{tpu_custom_call.1} parent=0
    #allocation2 [shape = 'u8[262144]{0}', space=vmem, size = 0x40000, scoped, tag = 'input window, operand 0']
    #allocation3 [shape = 's32[2]{0}', space=sflag, size = 0x8, scoped, tag = 'scoped memory for tpu_custom_call.1']
    #allocation4 [shape = 's32[2]{0}', space=sflag, size = 0x8, scoped, tag = 'scoped memory for tpu_custom_call.1']
    #allocation5 [shape = 'u8[131072]{0}', space=vmem, size = 0x20000, scoped, tag = 'input window, operand 1, single buffered']
    #allocation6 [shape = 's32[1]{0}', space=sflag, size = 0x4, scoped, tag = 'scoped memory for tpu_custom_call.1']
    #allocation7 [shape = 'u8[262144]{0}', space=vmem, size = 0x40000, scoped, tag = 'output window, operand 0']
    #allocation8 [shape = 'u8[262144]{0}', space=vmem, size = 0x40000, scoped, tag = 'output window, operand 1']
    #allocation9 [shape = 's32[2]{0}', space=sflag, size = 0x8, scoped, tag = 'scoped memory for tpu_custom_call.1']
    %11 = vsyncpa [#allocation3], 0
    %s12 = scalar_lea.sflag [#allocation3], 1
    %13 = vsyncpa %s12, 0
    %14 = vsyncpa [#allocation6], 0
    %15 = vsyncpa [#allocation4], 0
    %s16 = scalar_lea.sflag [#allocation4], 1
    %17 = vsyncpa %s16, 0
    %18 = vsyncpa [#allocation9], 0
    %s19 = scalar_lea.sflag [#allocation9], 1
    %20 = vsyncpa %s19, 0
    loop: start=0, step=1, limit=4
    $region2: #{tpu_custom_call.1} parent=1 // loop_pre_header
      _
    $region3: #{tpu_custom_call.1} parent=1 // loop_header
      %s22 = sphi 0, %s26
      %p23 = scmp.ge.s32.totalorder %s22, 4
      %s29 = sphi 0, %s41
      %s30 = sphi 0, %s37
      %s31 = sphi 0, %s29
      %s32 = sphi 0, %s30
      %s33 = sphi 0, %s31
      %s34 = sphi 0, %s32
      %s46 = sphi 0, %s48
      %s49 = sphi 0, %s46
      %s50 = sphi 0, %s49
      %s66 = sphi 0, %s50
      %s72 = sphi 0, %s74
      %s75 = sphi 0, %s72
      %s76 = sphi 0, %s75
      %s92 = sphi 0, %s76
      %s96 = sphi 0, %s96
      %s98 = sphi 0, %s96
      %s99 = sphi 0, %s98
      %s113 = sphi 0, %s99
      %s117 = sphi 0, %s117
      %s119 = sphi 0, %s117
      %s120 = sphi 0, %s119
      %s134 = sphi 0, %s120
      %s142 = sphi 0, %s144
      %s145 = sphi 0, %s142
      %s146 = sphi 0, %s145
      %s162 = sphi 0, %s146
      %s170 = sphi 0, %s172
      %s173 = sphi 0, %s170
      %s174 = sphi 0, %s173
      %s190 = sphi 0, %s174
    $region4: #{tpu_custom_call.1} parent=1 // loop_header_branch
      %25 = sbr.rel (%p23) target = $region8
    $region5: #{tpu_custom_call.1} parent=1 // loop_body
      %s27 = ssub.s32 %s22, 1
      %s28 = ssub.s32 %s22, 2
      %s35 = sadd.s32 1, %s30
      %p36 = scmp.ge.s32.totalorder %s35, 1
      %s37 = scalar_select %p36, 0, %s35
      %s38 = sadd.s32 1, %s29
      %s39 = scalar_select %p36, %s38, %s29
      %p40 = scmp.ge.s32.totalorder %s39, 2
      %s41 = scalar_select %p40, 0, %s39
      %s42 = ssub.s32 %s29, %s41
      %s43 = ssub.s32 %s30, %s37
      %s44 = sor.u32 %s42, %s43
      %p45 = scmp.eq.s32.totalorder %s44, 0
      %s47 = sadd.s32 %s46, 1
      %s48 = scalar_select %p45, %s46, %s47
      %p51 = pneg %p45
      %p52 = scmp.eq.s32.totalorder %s22, 1
      %p53 = por %p51, %p52
      %p54 = scmp.ne.s32.totalorder %s46, %s49
      %p55 = scmp.eq.s32.totalorder %s22, 0
      %p56 = por %p54, %p55
      %p57 = scmp.ne.s32.totalorder %s46, %s49
      %p58 = scmp.eq.s32.totalorder %s27, 1
      %p59 = por %p57, %p58
      %p60 = scmp.ne.s32.totalorder %s49, %s50
      %p61 = scmp.eq.s32.totalorder %s27, 0
      %p62 = por %p60, %p61
      %p63 = scmp.ne.s32.totalorder %s49, %s50
      %p64 = scmp.eq.s32.totalorder %s28, 1
      %p65 = por %p63, %p64
      %p67 = scmp.ne.s32.totalorder %s50, %s66
      %p68 = scmp.eq.s32.totalorder %s28, 0
      %p69 = por %p67, %p68
      %s70 = ssub.s32 %s30, %s37
      %p71 = scmp.eq.s32.totalorder %s70, 0
      %s73 = sadd.s32 %s72, 1
      %s74 = scalar_select %p71, %s72, %s73
      %p77 = pneg %p71
      %p78 = scmp.eq.s32.totalorder %s22, 1
      %p79 = por %p77, %p78
      %p80 = scmp.ne.s32.totalorder %s72, %s75
      %p81 = scmp.eq.s32.totalorder %s22, 0
      %p82 = por %p80, %p81
      %p83 = scmp.ne.s32.totalorder %s72, %s75
      %p84 = scmp.eq.s32.totalorder %s27, 1
      %p85 = por %p83, %p84
      %p86 = scmp.ne.s32.totalorder %s75, %s76
      %p87 = scmp.eq.s32.totalorder %s27, 0
      %p88 = por %p86, %p87
      %p89 = scmp.ne.s32.totalorder %s75, %s76
      %p90 = scmp.eq.s32.totalorder %s28, 1
      %p91 = por %p89, %p90
      %p93 = scmp.ne.s32.totalorder %s76, %s92
      %p94 = scmp.eq.s32.totalorder %s28, 0
      %p95 = por %p93, %p94
      %s97 = sadd.s32 %s96, 1
      %p100 = scmp.eq.s32.totalorder %s22, 1
      %p101 = scmp.ne.s32.totalorder %s96, %s98
      %p102 = scmp.eq.s32.totalorder %s22, 0
      %p103 = por %p101, %p102
      %p104 = scmp.ne.s32.totalorder %s96, %s98
      %p105 = scmp.eq.s32.totalorder %s27, 1
      %p106 = por %p104, %p105
      %p107 = scmp.ne.s32.totalorder %s98, %s99
      %p108 = scmp.eq.s32.totalorder %s27, 0
      %p109 = por %p107, %p108
      %p110 = scmp.ne.s32.totalorder %s98, %s99
      %p111 = scmp.eq.s32.totalorder %s28, 1
      %p112 = por %p110, %p111
      %p114 = scmp.ne.s32.totalorder %s99, %s113
      %p115 = scmp.eq.s32.totalorder %s28, 0
      %p116 = por %p114, %p115
      %s118 = sadd.s32 %s117, 1
      %p121 = scmp.eq.s32.totalorder %s22, 1
      %p122 = scmp.ne.s32.totalorder %s117, %s119
      %p123 = scmp.eq.s32.totalorder %s22, 0
      %p124 = por %p122, %p123
      %p125 = scmp.ne.s32.totalorder %s117, %s119
      %p126 = scmp.eq.s32.totalorder %s27, 1
      %p127 = por %p125, %p126
      %p128 = scmp.ne.s32.totalorder %s119, %s120
      %p129 = scmp.eq.s32.totalorder %s27, 0
      %p130 = por %p128, %p129
      %p131 = scmp.ne.s32.totalorder %s119, %s120
      %p132 = scmp.eq.s32.totalorder %s28, 1
      %p133 = por %p131, %p132
      %p135 = scmp.ne.s32.totalorder %s120, %s134
      %p136 = scmp.eq.s32.totalorder %s28, 0
      %p137 = por %p135, %p136
      %s138 = ssub.s32 %s29, %s41
      %s139 = ssub.s32 %s30, %s37
      %s140 = sor.u32 %s138, %s139
      %p141 = scmp.eq.s32.totalorder %s140, 0
      %s143 = sadd.s32 %s142, 1
      %s144 = scalar_select %p141, %s142, %s143
      %p147 = pneg %p141
      %p148 = scmp.eq.s32.totalorder %s22, 1
      %p149 = por %p147, %p148
      %p150 = scmp.ne.s32.totalorder %s142, %s145
      %p151 = scmp.eq.s32.totalorder %s22, 0
      %p152 = por %p150, %p151
      %p153 = scmp.ne.s32.totalorder %s142, %s145
      %p154 = scmp.eq.s32.totalorder %s27, 1
      %p155 = por %p153, %p154
      %p156 = scmp.ne.s32.totalorder %s145, %s146
      %p157 = scmp.eq.s32.totalorder %s27, 0
      %p158 = por %p156, %p157
      %p159 = scmp.ne.s32.totalorder %s145, %s146
      %p160 = scmp.eq.s32.totalorder %s28, 1
      %p161 = por %p159, %p160
      %p163 = scmp.ne.s32.totalorder %s146, %s162
      %p164 = scmp.eq.s32.totalorder %s28, 0
      %p165 = por %p163, %p164
      %s166 = ssub.s32 %s29, %s41
      %s167 = ssub.s32 %s30, %s37
      %s168 = sor.u32 %s166, %s167
      %p169 = scmp.eq.s32.totalorder %s168, 0
      %s171 = sadd.s32 %s170, 1
      %s172 = scalar_select %p169, %s170, %s171
      %p175 = pneg %p169
      %p176 = scmp.eq.s32.totalorder %s22, 1
      %p177 = por %p175, %p176
      %p178 = scmp.ne.s32.totalorder %s170, %s173
      %p179 = scmp.eq.s32.totalorder %s22, 0
      %p180 = por %p178, %p179
      %p181 = scmp.ne.s32.totalorder %s170, %s173
      %p182 = scmp.eq.s32.totalorder %s27, 1
      %p183 = por %p181, %p182
      %p184 = scmp.ne.s32.totalorder %s173, %s174
      %p185 = scmp.eq.s32.totalorder %s27, 0
      %p186 = por %p184, %p185
      %p187 = scmp.ne.s32.totalorder %s173, %s174
      %p188 = scmp.eq.s32.totalorder %s28, 1
      %p189 = por %p187, %p188
      %p191 = scmp.ne.s32.totalorder %s174, %s190
      %p192 = scmp.eq.s32.totalorder %s28, 0
      %p193 = por %p191, %p192
      %p194 = scmp.le.s32.totalorder 1, %s22
      %p195 = scmp.lt.s32.totalorder %s22, 3
      %p196 = pnand %p194, %p195
      %p197 = pneg %p196
      // Predicated region
      $region9: #{tpu_custom_call.1} parent=5 // pred_check
        _
      $region10: #{tpu_custom_call.1} parent=5 // pred_check_branch
        %199 = sbr.rel (%p196) target = $region12
      $region11: #{tpu_custom_call.1} parent=5 // pred_region
        %s200 = ssub.s32 %s22, 1
        // Predicated region
        $region13: #{tpu_custom_call.1} parent=11 // pred_check
          %p201 = pneg %p88
        $region14: #{tpu_custom_call.1} parent=11 // pred_check_branch
          %203 = sbr.rel (%p201) target = $region16
        $region15: #{tpu_custom_call.1} parent=11 // pred_region
          %s204 = smul.u32 32, %s32
          %s206 = ssub.s32 4096, 4096
          %207 = vsyncadd [#allocation6], %s206
          %s208 = smul.addr %s204, 128
          %s209 = scalar_lea.hbm %s1, %s208
          %s210 = sshll.u32 [#allocation5], 4
          %s211 = int_to_ptr.vmem [resolvable:$true] %s210
          %216 = dma.hbm_to_vmem [thread:$0]  %s209, 4096, %s211, [#allocation6], 128, 128, 8
        $region16: #{tpu_custom_call.1} parent=11 // pred_fallthru
          _
        // Predicated region
        $region17: #{tpu_custom_call.1} parent=11 // pred_check
          %p217 = pneg %p109
        $region18: #{tpu_custom_call.1} parent=11 // pred_check_branch
          %219 = sbr.rel (%p217) target = $region20
        $region19: #{tpu_custom_call.1} parent=11 // pred_region
          _
        $region20: #{tpu_custom_call.1} parent=11 // pred_fallthru
          _
        // Predicated region
        $region21: #{tpu_custom_call.1} parent=11 // pred_check
          %p220 = pneg %p130
        $region22: #{tpu_custom_call.1} parent=11 // pred_check_branch
          %222 = sbr.rel (%p220) target = $region24
        $region23: #{tpu_custom_call.1} parent=11 // pred_region
          _
        $region24: #{tpu_custom_call.1} parent=11 // pred_fallthru
          _
      $region12: #{tpu_custom_call.1} parent=5 // pred_fallthru
        _
      %p223 = scmp.lt.s32.totalorder %s22, 2
      // Predicated region
      $region25: #{tpu_custom_call.1} parent=5 // pred_check
        %p224 = pneg %p223
      $region26: #{tpu_custom_call.1} parent=5 // pred_check_branch
        %226 = sbr.rel (%p224) target = $region28
      $region27: #{tpu_custom_call.1} parent=5 // pred_region
        // Predicated region
        $region29: #{tpu_custom_call.1} parent=27 // pred_check
          %p227 = pneg %p56
        $region30: #{tpu_custom_call.1} parent=27 // pred_check_branch
          %229 = sbr.rel (%p227) target = $region32
        $region31: #{tpu_custom_call.1} parent=27 // pred_region
          %s230 = sand.u32 %s46, 1
          %s231 = scalar_lea.sflag [#allocation3], %s230
          %s232 = sand.u32 %s46, 1
          %s233 = smul.addr %s232, 256
          %s234 = scalar_lea.vmem [#allocation2], %s233
          %s235 = smul.u32 32, %s30
          %s237 = ssub.s32 4096, 4096
          %238 = vsyncadd %s231, %s237
          %s239 = smul.addr %s29, 32
          %s240 = sadd.s32 %s235, %s239
          %s241 = smul.addr %s240, 128
          %s242 = scalar_lea.hbm %s0, %s241
          %s243 = sshll.u32 %s234, 4
          %s244 = int_to_ptr.vmem [resolvable:$true] %s243
          %249 = dma.hbm_to_vmem [thread:$0]  %s242, 4096, %s244, %s231, 128, 128, 8
        $region32: #{tpu_custom_call.1} parent=27 // pred_fallthru
          _
      $region28: #{tpu_custom_call.1} parent=5 // pred_fallthru
        _
      %p250 = scmp.le.s32.totalorder 1, %s22
      %p251 = scmp.lt.s32.totalorder %s22, 3
      %p252 = pnand %p250, %p251
      %p253 = pneg %p252
      // Predicated region
      $region33: #{tpu_custom_call.1} parent=5 // pred_check
        _
      $region34: #{tpu_custom_call.1} parent=5 // pred_check_branch
        %255 = sbr.rel (%p252) target = $region36
      $region35: #{tpu_custom_call.1} parent=5 // pred_region
        %s256 = ssub.s32 %s22, 1
        %s257 = sand.u32 %s49, 1
        %s258 = scalar_lea.sflag [#allocation3], %s257
        %s259 = sand.u32 %s49, 1
        %s260 = smul.addr %s259, 256
        %s261 = scalar_lea.vmem [#allocation2], %s260
        // Predicated region
        $region37: #{tpu_custom_call.1} parent=35 // pred_check
          %p262 = pneg %p62
        $region38: #{tpu_custom_call.1} parent=35 // pred_check_branch
          %264 = sbr.rel (%p262) target = $region40
        $region39: #{tpu_custom_call.1} parent=35 // pred_region
          %265 = dma.done %s258, 4096
        $region40: #{tpu_custom_call.1} parent=35 // pred_fallthru
          _
        // Predicated region
        $region41: #{tpu_custom_call.1} parent=35 // pred_check
          %p266 = pneg %p88
        $region42: #{tpu_custom_call.1} parent=35 // pred_check_branch
          %268 = sbr.rel (%p266) target = $region44
        $region43: #{tpu_custom_call.1} parent=35 // pred_region
          %269 = dma.done [#allocation6], 4096
        $region44: #{tpu_custom_call.1} parent=35 // pred_fallthru
          _
        %s270 = sand.u32 %s49, 1
        %s271 = scalar_lea.sflag [#allocation3], %s270
        %s272 = sand.u32 %s49, 1
        %s273 = smul.addr %s272, 256
        %s274 = scalar_lea.vmem [#allocation2], %s273
        %p275 = pneg %p62
        %p276 = pneg %p59
        %p277 = pneg %p88
        %p278 = pneg %p85
        %p279 = pneg %p109
        %p280 = pneg %p106
        %p281 = pneg %p130
        %p282 = pneg %p127
        %p283 = pneg %p158
        %p284 = pneg %p155
        %s285 = sand.u32 %s145, 1
        %s286 = scalar_lea.sflag [#allocation4], %s285
        %s287 = sand.u32 %s145, 1
        %s288 = smul.addr %s287, 256
        %s289 = scalar_lea.vmem [#allocation7], %s288
        %p290 = pneg %p186
        %p291 = pneg %p183
        %s292 = sand.u32 %s173, 1
        %s293 = scalar_lea.sflag [#allocation9], %s292
        %s294 = sand.u32 %s173, 1
        %s295 = smul.addr %s294, 256
        %s296 = scalar_lea.vmem [#allocation8], %s295
        %s297 = smul.u32 32, %s32
        %s298 = smul.u32 32, %s32
        %s299 = smul.u32 32, %s32
        %s300 = smul.u32 32, %s32
        %v301 = vld [vmem:[%s261] sm:$0xff]
        %v302 = vld [vmem:[%s261 + $0x8] sm:$0xff]
        %v303 = vld [vmem:[%s261 + $0x10] sm:$0xff]
        %v304 = vld [vmem:[%s261 + $0x18] sm:$0xff]
        %v305 = vld [vmem:[%s261 + $0x20] sm:$0xff]
        %v306 = vld [vmem:[%s261 + $0x28] sm:$0xff]
        %v307 = vld [vmem:[%s261 + $0x30] sm:$0xff]
        %v308 = vld [vmem:[%s261 + $0x38] sm:$0xff]
        %v309 = vld [vmem:[%s261 + $0x40] sm:$0xff]
        %v310 = vld [vmem:[%s261 + $0x48] sm:$0xff]
        %v311 = vld [vmem:[%s261 + $0x50] sm:$0xff]
        %v312 = vld [vmem:[%s261 + $0x58] sm:$0xff]
        %v313 = vld [vmem:[%s261 + $0x60] sm:$0xff]
        %v314 = vld [vmem:[%s261 + $0x68] sm:$0xff]
        %v315 = vld [vmem:[%s261 + $0x70] sm:$0xff]
        %v316 = vld [vmem:[%s261 + $0x78] sm:$0xff]
        %v317 = vld [vmem:[%s261 + $0x80] sm:$0xff]
        %v318 = vld [vmem:[%s261 + $0x88] sm:$0xff]
        %v319 = vld [vmem:[%s261 + $0x90] sm:$0xff]
        %v320 = vld [vmem:[%s261 + $0x98] sm:$0xff]
        %v321 = vld [vmem:[%s261 + $0xa0] sm:$0xff]
        %v322 = vld [vmem:[%s261 + $0xa8] sm:$0xff]
        %v323 = vld [vmem:[%s261 + $0xb0] sm:$0xff]
        %v324 = vld [vmem:[%s261 + $0xb8] sm:$0xff]
        %v325 = vld [vmem:[%s261 + $0xc0] sm:$0xff]
        %v326 = vld [vmem:[%s261 + $0xc8] sm:$0xff]
        %v327 = vld [vmem:[%s261 + $0xd0] sm:$0xff]
        %v328 = vld [vmem:[%s261 + $0xd8] sm:$0xff]
        %v329 = vld [vmem:[%s261 + $0xe0] sm:$0xff]
        %v330 = vld [vmem:[%s261 + $0xe8] sm:$0xff]
        %v331 = vld [vmem:[%s261 + $0xf0] sm:$0xff]
        %v332 = vld [vmem:[%s261 + $0xf8] sm:$0xff]
        %v333 = vld [vmem:[#allocation5] sm:$0xff]
        %v334 = vld [vmem:[#allocation5 + $0x8] sm:$0xff]
        %v335 = vld [vmem:[#allocation5 + $0x10] sm:$0xff]
        %v336 = vld [vmem:[#allocation5 + $0x18] sm:$0xff]
        %v337 = vld [vmem:[#allocation5 + $0x20] sm:$0xff]
        %v338 = vld [vmem:[#allocation5 + $0x28] sm:$0xff]
        %v339 = vld [vmem:[#allocation5 + $0x30] sm:$0xff]
        %v340 = vld [vmem:[#allocation5 + $0x38] sm:$0xff]
        %v341 = vld [vmem:[#allocation5 + $0x40] sm:$0xff]
        %v342 = vld [vmem:[#allocation5 + $0x48] sm:$0xff]
        %v343 = vld [vmem:[#allocation5 + $0x50] sm:$0xff]
        %v344 = vld [vmem:[#allocation5 + $0x58] sm:$0xff]
        %v345 = vld [vmem:[#allocation5 + $0x60] sm:$0xff]
        %v346 = vld [vmem:[#allocation5 + $0x68] sm:$0xff]
        %v347 = vld [vmem:[#allocation5 + $0x70] sm:$0xff]
        %v348 = vld [vmem:[#allocation5 + $0x78] sm:$0xff]
        %v349 = vld [vmem:[#allocation5 + $0x80] sm:$0xff]
        %v350 = vld [vmem:[#allocation5 + $0x88] sm:$0xff]
        %v351 = vld [vmem:[#allocation5 + $0x90] sm:$0xff]
        %v352 = vld [vmem:[#allocation5 + $0x98] sm:$0xff]
        %v353 = vld [vmem:[#allocation5 + $0xa0] sm:$0xff]
        %v354 = vld [vmem:[#allocation5 + $0xa8] sm:$0xff]
        %v355 = vld [vmem:[#allocation5 + $0xb0] sm:$0xff]
        %v356 = vld [vmem:[#allocation5 + $0xb8] sm:$0xff]
        %v357 = vld [vmem:[#allocation5 + $0xc0] sm:$0xff]
        %v358 = vld [vmem:[#allocation5 + $0xc8] sm:$0xff]
        %v359 = vld [vmem:[#allocation5 + $0xd0] sm:$0xff]
        %v360 = vld [vmem:[#allocation5 + $0xd8] sm:$0xff]
        %v361 = vld [vmem:[#allocation5 + $0xe0] sm:$0xff]
        %v362 = vld [vmem:[#allocation5 + $0xe8] sm:$0xff]
        %v363 = vld [vmem:[#allocation5 + $0xf0] sm:$0xff]
        %v364 = vld [vmem:[#allocation5 + $0xf8] sm:$0xff]
        %v365 = vadd.f32 %v301, %v333
        %v366 = vadd.f32 %v302, %v334
        %v367 = vadd.f32 %v303, %v335
        %v368 = vadd.f32 %v304, %v336
        %v369 = vadd.f32 %v305, %v337
        %v370 = vadd.f32 %v306, %v338
        %v371 = vadd.f32 %v307, %v339
        %v372 = vadd.f32 %v308, %v340
        %v373 = vadd.f32 %v309, %v341
        %v374 = vadd.f32 %v310, %v342
        %v375 = vadd.f32 %v311, %v343
        %v376 = vadd.f32 %v312, %v344
        %v377 = vadd.f32 %v313, %v345
        %v378 = vadd.f32 %v314, %v346
        %v379 = vadd.f32 %v315, %v347
        %v380 = vadd.f32 %v316, %v348
        %v381 = vadd.f32 %v317, %v349
        %v382 = vadd.f32 %v318, %v350
        %v383 = vadd.f32 %v319, %v351
        %v384 = vadd.f32 %v320, %v352
        %v385 = vadd.f32 %v321, %v353
        %v386 = vadd.f32 %v322, %v354
        %v387 = vadd.f32 %v323, %v355
        %v388 = vadd.f32 %v324, %v356
        %v389 = vadd.f32 %v325, %v357
        %v390 = vadd.f32 %v326, %v358
        %v391 = vadd.f32 %v327, %v359
        %v392 = vadd.f32 %v328, %v360
        %v393 = vadd.f32 %v329, %v361
        %v394 = vadd.f32 %v330, %v362
        %v395 = vadd.f32 %v331, %v363
        %v396 = vadd.f32 %v332, %v364
        %397 = vst [vmem:[%s289] sm:$0xff] %v365
        %398 = vst [vmem:[%s289 + $0x8] sm:$0xff] %v366
        %399 = vst [vmem:[%s289 + $0x10] sm:$0xff] %v367
        %400 = vst [vmem:[%s289 + $0x18] sm:$0xff] %v368
        %401 = vst [vmem:[%s289 + $0x20] sm:$0xff] %v369
        %402 = vst [vmem:[%s289 + $0x28] sm:$0xff] %v370
        %403 = vst [vmem:[%s289 + $0x30] sm:$0xff] %v371
        %404 = vst [vmem:[%s289 + $0x38] sm:$0xff] %v372
        %405 = vst [vmem:[%s289 + $0x40] sm:$0xff] %v373
        %406 = vst [vmem:[%s289 + $0x48] sm:$0xff] %v374
        %407 = vst [vmem:[%s289 + $0x50] sm:$0xff] %v375
        %408 = vst [vmem:[%s289 + $0x58] sm:$0xff] %v376
        %409 = vst [vmem:[%s289 + $0x60] sm:$0xff] %v377
        %410 = vst [vmem:[%s289 + $0x68] sm:$0xff] %v378
        %411 = vst [vmem:[%s289 + $0x70] sm:$0xff] %v379
        %412 = vst [vmem:[%s289 + $0x78] sm:$0xff] %v380
        %413 = vst [vmem:[%s289 + $0x80] sm:$0xff] %v381
        %414 = vst [vmem:[%s289 + $0x88] sm:$0xff] %v382
        %415 = vst [vmem:[%s289 + $0x90] sm:$0xff] %v383
        %416 = vst [vmem:[%s289 + $0x98] sm:$0xff] %v384
        %417 = vst [vmem:[%s289 + $0xa0] sm:$0xff] %v385
        %418 = vst [vmem:[%s289 + $0xa8] sm:$0xff] %v386
        %419 = vst [vmem:[%s289 + $0xb0] sm:$0xff] %v387
        %420 = vst [vmem:[%s289 + $0xb8] sm:$0xff] %v388
        %421 = vst [vmem:[%s289 + $0xc0] sm:$0xff] %v389
        %422 = vst [vmem:[%s289 + $0xc8] sm:$0xff] %v390
        %423 = vst [vmem:[%s289 + $0xd0] sm:$0xff] %v391
        %424 = vst [vmem:[%s289 + $0xd8] sm:$0xff] %v392
        %425 = vst [vmem:[%s289 + $0xe0] sm:$0xff] %v393
        %426 = vst [vmem:[%s289 + $0xe8] sm:$0xff] %v394
        %427 = vst [vmem:[%s289 + $0xf0] sm:$0xff] %v395
        %428 = vst [vmem:[%s289 + $0xf8] sm:$0xff] %v396
        %429 = vadd.xlane.f32.xlu0 %v365
        %v430 = vpop.xlane.xlu0 %429
        %431 = vadd.xlane.f32.xlu0 %v366
        %v432 = vpop.xlane.xlu0 %431
        %433 = vadd.xlane.f32.xlu0 %v367
        %v434 = vpop.xlane.xlu0 %433
        %435 = vadd.xlane.f32.xlu0 %v368
        %v436 = vpop.xlane.xlu0 %435
        %437 = vadd.xlane.f32.xlu0 %v369
        %v438 = vpop.xlane.xlu0 %437
        %439 = vadd.xlane.f32.xlu0 %v370
        %v440 = vpop.xlane.xlu0 %439
        %441 = vadd.xlane.f32.xlu0 %v371
        %v442 = vpop.xlane.xlu0 %441
        %443 = vadd.xlane.f32.xlu0 %v372
        %v444 = vpop.xlane.xlu0 %443
        %445 = vadd.xlane.f32.xlu0 %v373
        %v446 = vpop.xlane.xlu0 %445
        %447 = vadd.xlane.f32.xlu0 %v374
        %v448 = vpop.xlane.xlu0 %447
        %449 = vadd.xlane.f32.xlu0 %v375
        %v450 = vpop.xlane.xlu0 %449
        %451 = vadd.xlane.f32.xlu0 %v376
        %v452 = vpop.xlane.xlu0 %451
        %453 = vadd.xlane.f32.xlu0 %v377
        %v454 = vpop.xlane.xlu0 %453
        %455 = vadd.xlane.f32.xlu0 %v378
        %v456 = vpop.xlane.xlu0 %455
        %457 = vadd.xlane.f32.xlu0 %v379
        %v458 = vpop.xlane.xlu0 %457
        %459 = vadd.xlane.f32.xlu0 %v380
        %v460 = vpop.xlane.xlu0 %459
        %461 = vadd.xlane.f32.xlu0 %v381
        %v462 = vpop.xlane.xlu0 %461
        %463 = vadd.xlane.f32.xlu0 %v382
        %v464 = vpop.xlane.xlu0 %463
        %465 = vadd.xlane.f32.xlu0 %v383
        %v466 = vpop.xlane.xlu0 %465
        %467 = vadd.xlane.f32.xlu0 %v384
        %v468 = vpop.xlane.xlu0 %467
        %469 = vadd.xlane.f32.xlu0 %v385
        %v470 = vpop.xlane.xlu0 %469
        %471 = vadd.xlane.f32.xlu0 %v386
        %v472 = vpop.xlane.xlu0 %471
        %473 = vadd.xlane.f32.xlu0 %v387
        %v474 = vpop.xlane.xlu0 %473
        %475 = vadd.xlane.f32.xlu0 %v388
        %v476 = vpop.xlane.xlu0 %475
        %477 = vadd.xlane.f32.xlu0 %v389
        %v478 = vpop.xlane.xlu0 %477
        %479 = vadd.xlane.f32.xlu0 %v390
        %v480 = vpop.xlane.xlu0 %479
        %481 = vadd.xlane.f32.xlu0 %v391
        %v482 = vpop.xlane.xlu0 %481
        %483 = vadd.xlane.f32.xlu0 %v392
        %v484 = vpop.xlane.xlu0 %483
        %485 = vadd.xlane.f32.xlu0 %v393
        %v486 = vpop.xlane.xlu0 %485
        %487 = vadd.xlane.f32.xlu0 %v394
        %v488 = vpop.xlane.xlu0 %487
        %489 = vadd.xlane.f32.xlu0 %v395
        %v490 = vpop.xlane.xlu0 %489
        %491 = vadd.xlane.f32.xlu0 %v396
        %v492 = vpop.xlane.xlu0 %491
        %v493 = vrcp.pop 128.0
        %v494 = vmul.f32 %v430, %v493
        %v495 = vmul.f32 %v432, %v493
        %v496 = vmul.f32 %v434, %v493
        %v497 = vmul.f32 %v436, %v493
        %v498 = vmul.f32 %v438, %v493
        %v499 = vmul.f32 %v440, %v493
        %v500 = vmul.f32 %v442, %v493
        %v501 = vmul.f32 %v444, %v493
        %v502 = vmul.f32 %v446, %v493
        %v503 = vmul.f32 %v448, %v493
        %v504 = vmul.f32 %v450, %v493
        %v505 = vmul.f32 %v452, %v493
        %v506 = vmul.f32 %v454, %v493
        %v507 = vmul.f32 %v456, %v493
        %v508 = vmul.f32 %v458, %v493
        %v509 = vmul.f32 %v460, %v493
        %v510 = vmul.f32 %v462, %v493
        %v511 = vmul.f32 %v464, %v493
        %v512 = vmul.f32 %v466, %v493
        %v513 = vmul.f32 %v468, %v493
        %v514 = vmul.f32 %v470, %v493
        %v515 = vmul.f32 %v472, %v493
        %v516 = vmul.f32 %v474, %v493
        %v517 = vmul.f32 %v476, %v493
        %v518 = vmul.f32 %v478, %v493
        %v519 = vmul.f32 %v480, %v493
        %v520 = vmul.f32 %v482, %v493
        %v521 = vmul.f32 %v484, %v493
        %v522 = vmul.f32 %v486, %v493
        %v523 = vmul.f32 %v488, %v493
        %v524 = vmul.f32 %v490, %v493
        %v525 = vmul.f32 %v492, %v493
        %v526 = vsub.f32 %v365, %v494
        %v527 = vsub.f32 %v366, %v495
        %v528 = vsub.f32 %v367, %v496
        %v529 = vsub.f32 %v368, %v497
        %v530 = vsub.f32 %v369, %v498
        %v531 = vsub.f32 %v370, %v499
        %v532 = vsub.f32 %v371, %v500
        %v533 = vsub.f32 %v372, %v501
        %v534 = vsub.f32 %v373, %v502
        %v535 = vsub.f32 %v374, %v503
        %v536 = vsub.f32 %v375, %v504
        %v537 = vsub.f32 %v376, %v505
        %v538 = vsub.f32 %v377, %v506
        %v539 = vsub.f32 %v378, %v507
        %v540 = vsub.f32 %v379, %v508
        %v541 = vsub.f32 %v380, %v509
        %v542 = vsub.f32 %v381, %v510
        %v543 = vsub.f32 %v382, %v511
        %v544 = vsub.f32 %v383, %v512
        %v545 = vsub.f32 %v384, %v513
        %v546 = vsub.f32 %v385, %v514
        %v547 = vsub.f32 %v386, %v515
        %v548 = vsub.f32 %v387, %v516
        %v549 = vsub.f32 %v388, %v517
        %v550 = vsub.f32 %v389, %v518
        %v551 = vsub.f32 %v390, %v519
        %v552 = vsub.f32 %v391, %v520
        %v553 = vsub.f32 %v392, %v521
        %v554 = vsub.f32 %v393, %v522
        %v555 = vsub.f32 %v394, %v523
        %v556 = vsub.f32 %v395, %v524
        %v557 = vsub.f32 %v396, %v525
        %v558 = vmul.f32 %v526, %v526
        %v559 = vmul.f32 %v527, %v527
        %v560 = vmul.f32 %v528, %v528
        %v561 = vmul.f32 %v529, %v529
        %v562 = vmul.f32 %v530, %v530
        %v563 = vmul.f32 %v531, %v531
        %v564 = vmul.f32 %v532, %v532
        %v565 = vmul.f32 %v533, %v533
        %v566 = vmul.f32 %v534, %v534
        %v567 = vmul.f32 %v535, %v535
        %v568 = vmul.f32 %v536, %v536
        %v569 = vmul.f32 %v537, %v537
        %v570 = vmul.f32 %v538, %v538
        %v571 = vmul.f32 %v539, %v539
        %v572 = vmul.f32 %v540, %v540
        %v573 = vmul.f32 %v541, %v541
        %v574 = vmul.f32 %v542, %v542
        %v575 = vmul.f32 %v543, %v543
        %v576 = vmul.f32 %v544, %v544
        %v577 = vmul.f32 %v545, %v545
        %v578 = vmul.f32 %v546, %v546
        %v579 = vmul.f32 %v547, %v547
        %v580 = vmul.f32 %v548, %v548
        %v581 = vmul.f32 %v549, %v549
        %v582 = vmul.f32 %v550, %v550
        %v583 = vmul.f32 %v551, %v551
        %v584 = vmul.f32 %v552, %v552
        %v585 = vmul.f32 %v553, %v553
        %v586 = vmul.f32 %v554, %v554
        %v587 = vmul.f32 %v555, %v555
        %v588 = vmul.f32 %v556, %v556
        %v589 = vmul.f32 %v557, %v557
        %590 = vadd.xlane.f32.xlu0 %v558
        %v591 = vpop.xlane.xlu0 %590
        %592 = vadd.xlane.f32.xlu0 %v559
        %v593 = vpop.xlane.xlu0 %592
        %594 = vadd.xlane.f32.xlu0 %v560
        %v595 = vpop.xlane.xlu0 %594
        %596 = vadd.xlane.f32.xlu0 %v561
        %v597 = vpop.xlane.xlu0 %596
        %598 = vadd.xlane.f32.xlu0 %v562
        %v599 = vpop.xlane.xlu0 %598
        %600 = vadd.xlane.f32.xlu0 %v563
        %v601 = vpop.xlane.xlu0 %600
        %602 = vadd.xlane.f32.xlu0 %v564
        %v603 = vpop.xlane.xlu0 %602
        %604 = vadd.xlane.f32.xlu0 %v565
        %v605 = vpop.xlane.xlu0 %604
        %606 = vadd.xlane.f32.xlu0 %v566
        %v607 = vpop.xlane.xlu0 %606
        %608 = vadd.xlane.f32.xlu0 %v567
        %v609 = vpop.xlane.xlu0 %608
        %610 = vadd.xlane.f32.xlu0 %v568
        %v611 = vpop.xlane.xlu0 %610
        %612 = vadd.xlane.f32.xlu0 %v569
        %v613 = vpop.xlane.xlu0 %612
        %614 = vadd.xlane.f32.xlu0 %v570
        %v615 = vpop.xlane.xlu0 %614
        %616 = vadd.xlane.f32.xlu0 %v571
        %v617 = vpop.xlane.xlu0 %616
        %618 = vadd.xlane.f32.xlu0 %v572
        %v619 = vpop.xlane.xlu0 %618
        %620 = vadd.xlane.f32.xlu0 %v573
        %v621 = vpop.xlane.xlu0 %620
        %622 = vadd.xlane.f32.xlu0 %v574
        %v623 = vpop.xlane.xlu0 %622
        %624 = vadd.xlane.f32.xlu0 %v575
        %v625 = vpop.xlane.xlu0 %624
        %626 = vadd.xlane.f32.xlu0 %v576
        %v627 = vpop.xlane.xlu0 %626
        %628 = vadd.xlane.f32.xlu0 %v577
        %v629 = vpop.xlane.xlu0 %628
        %630 = vadd.xlane.f32.xlu0 %v578
        %v631 = vpop.xlane.xlu0 %630
        %632 = vadd.xlane.f32.xlu0 %v579
        %v633 = vpop.xlane.xlu0 %632
        %634 = vadd.xlane.f32.xlu0 %v580
        %v635 = vpop.xlane.xlu0 %634
        %636 = vadd.xlane.f32.xlu0 %v581
        %v637 = vpop.xlane.xlu0 %636
        %638 = vadd.xlane.f32.xlu0 %v582
        %v639 = vpop.xlane.xlu0 %638
        %640 = vadd.xlane.f32.xlu0 %v583
        %v641 = vpop.xlane.xlu0 %640
        %642 = vadd.xlane.f32.xlu0 %v584
        %v643 = vpop.xlane.xlu0 %642
        %644 = vadd.xlane.f32.xlu0 %v585
        %v645 = vpop.xlane.xlu0 %644
        %646 = vadd.xlane.f32.xlu0 %v586
        %v647 = vpop.xlane.xlu0 %646
        %648 = vadd.xlane.f32.xlu0 %v587
        %v649 = vpop.xlane.xlu0 %648
        %650 = vadd.xlane.f32.xlu0 %v588
        %v651 = vpop.xlane.xlu0 %650
        %652 = vadd.xlane.f32.xlu0 %v589
        %v653 = vpop.xlane.xlu0 %652
        %v654 = vmul.f32 %v591, %v493
        %v655 = vmul.f32 %v593, %v493
        %v656 = vmul.f32 %v595, %v493
        %v657 = vmul.f32 %v597, %v493
        %v658 = vmul.f32 %v599, %v493
        %v659 = vmul.f32 %v601, %v493
        %v660 = vmul.f32 %v603, %v493
        %v661 = vmul.f32 %v605, %v493
        %v662 = vmul.f32 %v607, %v493
        %v663 = vmul.f32 %v609, %v493
        %v664 = vmul.f32 %v611, %v493
        %v665 = vmul.f32 %v613, %v493
        %v666 = vmul.f32 %v615, %v493
        %v667 = vmul.f32 %v617, %v493
        %v668 = vmul.f32 %v619, %v493
        %v669 = vmul.f32 %v621, %v493
        %v670 = vmul.f32 %v623, %v493
        %v671 = vmul.f32 %v625, %v493
        %v672 = vmul.f32 %v627, %v493
        %v673 = vmul.f32 %v629, %v493
        %v674 = vmul.f32 %v631, %v493
        %v675 = vmul.f32 %v633, %v493
        %v676 = vmul.f32 %v635, %v493
        %v677 = vmul.f32 %v637, %v493
        %v678 = vmul.f32 %v639, %v493
        %v679 = vmul.f32 %v641, %v493
        %v680 = vmul.f32 %v643, %v493
        %v681 = vmul.f32 %v645, %v493
        %v682 = vmul.f32 %v647, %v493
        %v683 = vmul.f32 %v649, %v493
        %v684 = vmul.f32 %v651, %v493
        %v685 = vmul.f32 %v653, %v493
        %v686 = vadd.f32 %v654, 1e-05
        %v687 = vadd.f32 %v655, 1e-05
        %v688 = vadd.f32 %v656, 1e-05
        %v689 = vadd.f32 %v657, 1e-05
        %v690 = vadd.f32 %v658, 1e-05
        %v691 = vadd.f32 %v659, 1e-05
        %v692 = vadd.f32 %v660, 1e-05
        %v693 = vadd.f32 %v661, 1e-05
        %v694 = vadd.f32 %v662, 1e-05
        %v695 = vadd.f32 %v663, 1e-05
        %v696 = vadd.f32 %v664, 1e-05
        %v697 = vadd.f32 %v665, 1e-05
        %v698 = vadd.f32 %v666, 1e-05
        %v699 = vadd.f32 %v667, 1e-05
        %v700 = vadd.f32 %v668, 1e-05
        %v701 = vadd.f32 %v669, 1e-05
        %v702 = vadd.f32 %v670, 1e-05
        %v703 = vadd.f32 %v671, 1e-05
        %v704 = vadd.f32 %v672, 1e-05
        %v705 = vadd.f32 %v673, 1e-05
        %v706 = vadd.f32 %v674, 1e-05
        %v707 = vadd.f32 %v675, 1e-05
        %v708 = vadd.f32 %v676, 1e-05
        %v709 = vadd.f32 %v677, 1e-05
        %v710 = vadd.f32 %v678, 1e-05
        %v711 = vadd.f32 %v679, 1e-05
        %v712 = vadd.f32 %v680, 1e-05
        %v713 = vadd.f32 %v681, 1e-05
        %v714 = vadd.f32 %v682, 1e-05
        %v715 = vadd.f32 %v683, 1e-05
        %v716 = vadd.f32 %v684, 1e-05
        %v717 = vadd.f32 %v685, 1e-05
        %v718 = vrsqrt.pop %v686
        %v719 = vrsqrt.pop %v687
        %v720 = vrsqrt.pop %v688
        %v721 = vrsqrt.pop %v689
        %v722 = vrsqrt.pop %v690
        %v723 = vrsqrt.pop %v691
        %v724 = vrsqrt.pop %v692
        %v725 = vrsqrt.pop %v693
        %v726 = vrsqrt.pop %v694
        %v727 = vrsqrt.pop %v695
        %v728 = vrsqrt.pop %v696
        %v729 = vrsqrt.pop %v697
        %v730 = vrsqrt.pop %v698
        %v731 = vrsqrt.pop %v699
        %v732 = vrsqrt.pop %v700
        %v733 = vrsqrt.pop %v701
        %v734 = vrsqrt.pop %v702
        %v735 = vrsqrt.pop %v703
        %v736 = vrsqrt.pop %v704
        %v737 = vrsqrt.pop %v705
        %v738 = vrsqrt.pop %v706
        %v739 = vrsqrt.pop %v707
        %v740 = vrsqrt.pop %v708
        %v741 = vrsqrt.pop %v709
        %v742 = vrsqrt.pop %v710
        %v743 = vrsqrt.pop %v711
        %v744 = vrsqrt.pop %v712
        %v745 = vrsqrt.pop %v713
        %v746 = vrsqrt.pop %v714
        %v747 = vrsqrt.pop %v715
        %v748 = vrsqrt.pop %v716
        %v749 = vrsqrt.pop %v717
        %v750 = vmul.f32 %v526, %v718
        %v751 = vmul.f32 %v527, %v719
        %v752 = vmul.f32 %v528, %v720
        %v753 = vmul.f32 %v529, %v721
        %v754 = vmul.f32 %v530, %v722
        %v755 = vmul.f32 %v531, %v723
        %v756 = vmul.f32 %v532, %v724
        %v757 = vmul.f32 %v533, %v725
        %v758 = vmul.f32 %v534, %v726
        %v759 = vmul.f32 %v535, %v727
        %v760 = vmul.f32 %v536, %v728
        %v761 = vmul.f32 %v537, %v729
        %v762 = vmul.f32 %v538, %v730
        %v763 = vmul.f32 %v539, %v731
        %v764 = vmul.f32 %v540, %v732
        %v765 = vmul.f32 %v541, %v733
        %v766 = vmul.f32 %v542, %v734
        %v767 = vmul.f32 %v543, %v735
        %v768 = vmul.f32 %v544, %v736
        %v769 = vmul.f32 %v545, %v737
        %v770 = vmul.f32 %v546, %v738
        %v771 = vmul.f32 %v547, %v739
        %v772 = vmul.f32 %v548, %v740
        %v773 = vmul.f32 %v549, %v741
        %v774 = vmul.f32 %v550, %v742
        %v775 = vmul.f32 %v551, %v743
        %v776 = vmul.f32 %v552, %v744
        %v777 = vmul.f32 %v553, %v745
        %v778 = vmul.f32 %v554, %v746
        %v779 = vmul.f32 %v555, %v747
        %v780 = vmul.f32 %v556, %v748
        %v781 = vmul.f32 %v557, %v749
        %v782 = vld [vmem:[%s2] sm:$0x1]
        %v784 = vlaneseq
        %v785 = vshrl.u32 %v784, 7
        %v786 = vsub.s32 0, %v785
        %v787 = vrot.slane %v782, %v786
        %v789 = vmul.f32 %v750, %v787
        %v790 = vmul.f32 %v751, %v787
        %v791 = vmul.f32 %v752, %v787
        %v792 = vmul.f32 %v753, %v787
        %v793 = vmul.f32 %v754, %v787
        %v794 = vmul.f32 %v755, %v787
        %v795 = vmul.f32 %v756, %v787
        %v796 = vmul.f32 %v757, %v787
        %v797 = vmul.f32 %v758, %v787
        %v798 = vmul.f32 %v759, %v787
        %v799 = vmul.f32 %v760, %v787
        %v800 = vmul.f32 %v761, %v787
        %v801 = vmul.f32 %v762, %v787
        %v802 = vmul.f32 %v763, %v787
        %v803 = vmul.f32 %v764, %v787
        %v804 = vmul.f32 %v765, %v787
        %v805 = vmul.f32 %v766, %v787
        %v806 = vmul.f32 %v767, %v787
        %v807 = vmul.f32 %v768, %v787
        %v808 = vmul.f32 %v769, %v787
        %v809 = vmul.f32 %v770, %v787
        %v810 = vmul.f32 %v771, %v787
        %v811 = vmul.f32 %v772, %v787
        %v812 = vmul.f32 %v773, %v787
        %v813 = vmul.f32 %v774, %v787
        %v814 = vmul.f32 %v775, %v787
        %v815 = vmul.f32 %v776, %v787
        %v816 = vmul.f32 %v777, %v787
        %v817 = vmul.f32 %v778, %v787
        %v818 = vmul.f32 %v779, %v787
        %v819 = vmul.f32 %v780, %v787
        %v820 = vmul.f32 %v781, %v787
        %v821 = vld [vmem:[%s3] sm:$0x1]
        %v823 = vlaneseq
        %v824 = vshrl.u32 %v823, 7
        %v825 = vsub.s32 0, %v824
        %v826 = vrot.slane %v821, %v825
        %v828 = vadd.f32 %v789, %v826
        %v829 = vadd.f32 %v790, %v826
        %v830 = vadd.f32 %v791, %v826
        %v831 = vadd.f32 %v792, %v826
        %v832 = vadd.f32 %v793, %v826
        %v833 = vadd.f32 %v794, %v826
        %v834 = vadd.f32 %v795, %v826
        %v835 = vadd.f32 %v796, %v826
        %v836 = vadd.f32 %v797, %v826
        %v837 = vadd.f32 %v798, %v826
        %v838 = vadd.f32 %v799, %v826
        %v839 = vadd.f32 %v800, %v826
        %v840 = vadd.f32 %v801, %v826
        %v841 = vadd.f32 %v802, %v826
        %v842 = vadd.f32 %v803, %v826
        %v843 = vadd.f32 %v804, %v826
        %v844 = vadd.f32 %v805, %v826
        %v845 = vadd.f32 %v806, %v826
        %v846 = vadd.f32 %v807, %v826
        %v847 = vadd.f32 %v808, %v826
        %v848 = vadd.f32 %v809, %v826
        %v849 = vadd.f32 %v810, %v826
        %v850 = vadd.f32 %v811, %v826
        %v851 = vadd.f32 %v812, %v826
        %v852 = vadd.f32 %v813, %v826
        %v853 = vadd.f32 %v814, %v826
        %v854 = vadd.f32 %v815, %v826
        %v855 = vadd.f32 %v816, %v826
        %v856 = vadd.f32 %v817, %v826
        %v857 = vadd.f32 %v818, %v826
        %v858 = vadd.f32 %v819, %v826
        %v859 = vadd.f32 %v820, %v826
        %860 = vst [vmem:[%s296] sm:$0xff] %v828
        %861 = vst [vmem:[%s296 + $0x8] sm:$0xff] %v829
        %862 = vst [vmem:[%s296 + $0x10] sm:$0xff] %v830
        %863 = vst [vmem:[%s296 + $0x18] sm:$0xff] %v831
        %864 = vst [vmem:[%s296 + $0x20] sm:$0xff] %v832
        %865 = vst [vmem:[%s296 + $0x28] sm:$0xff] %v833
        %866 = vst [vmem:[%s296 + $0x30] sm:$0xff] %v834
        %867 = vst [vmem:[%s296 + $0x38] sm:$0xff] %v835
        %868 = vst [vmem:[%s296 + $0x40] sm:$0xff] %v836
        %869 = vst [vmem:[%s296 + $0x48] sm:$0xff] %v837
        %870 = vst [vmem:[%s296 + $0x50] sm:$0xff] %v838
        %871 = vst [vmem:[%s296 + $0x58] sm:$0xff] %v839
        %872 = vst [vmem:[%s296 + $0x60] sm:$0xff] %v840
        %873 = vst [vmem:[%s296 + $0x68] sm:$0xff] %v841
        %874 = vst [vmem:[%s296 + $0x70] sm:$0xff] %v842
        %875 = vst [vmem:[%s296 + $0x78] sm:$0xff] %v843
        %876 = vst [vmem:[%s296 + $0x80] sm:$0xff] %v844
        %877 = vst [vmem:[%s296 + $0x88] sm:$0xff] %v845
        %878 = vst [vmem:[%s296 + $0x90] sm:$0xff] %v846
        %879 = vst [vmem:[%s296 + $0x98] sm:$0xff] %v847
        %880 = vst [vmem:[%s296 + $0xa0] sm:$0xff] %v848
        %881 = vst [vmem:[%s296 + $0xa8] sm:$0xff] %v849
        %882 = vst [vmem:[%s296 + $0xb0] sm:$0xff] %v850
        %883 = vst [vmem:[%s296 + $0xb8] sm:$0xff] %v851
        %884 = vst [vmem:[%s296 + $0xc0] sm:$0xff] %v852
        %885 = vst [vmem:[%s296 + $0xc8] sm:$0xff] %v853
        %886 = vst [vmem:[%s296 + $0xd0] sm:$0xff] %v854
        %887 = vst [vmem:[%s296 + $0xd8] sm:$0xff] %v855
        %888 = vst [vmem:[%s296 + $0xe0] sm:$0xff] %v856
        %889 = vst [vmem:[%s296 + $0xe8] sm:$0xff] %v857
        %890 = vst [vmem:[%s296 + $0xf0] sm:$0xff] %v858
        %891 = vst [vmem:[%s296 + $0xf8] sm:$0xff] %v859
        %s892 = sand.u32 %s145, 1
        %s893 = scalar_lea.sflag [#allocation4], %s892
        %s894 = sand.u32 %s145, 1
        %s895 = smul.addr %s894, 256
        %s896 = scalar_lea.vmem [#allocation7], %s895
        %s897 = sand.u32 %s173, 1
        %s898 = scalar_lea.sflag [#allocation9], %s897
        %s899 = sand.u32 %s173, 1
        %s900 = smul.addr %s899, 256
        %s901 = scalar_lea.vmem [#allocation8], %s900
        // Predicated region
        $region45: #{tpu_custom_call.1} parent=35 // pred_check
          %p902 = pneg %p155
        $region46: #{tpu_custom_call.1} parent=35 // pred_check_branch
          %904 = sbr.rel (%p902) target = $region48
        $region47: #{tpu_custom_call.1} parent=35 // pred_region
          %s905 = smul.u32 32, %s32
          %s907 = ssub.s32 4096, 4096
          %908 = vsyncadd %s893, %s907
          %s909 = smul.addr %s31, 32
          %s910 = sadd.s32 %s905, %s909
          %s911 = smul.addr %s910, 128
          %s912 = scalar_lea.hbm %s4, %s911
          %s913 = sshll.u32 %s896, 4
          %s914 = int_to_ptr.vmem [resolvable:$true] %s913
          %919 = dma.vmem_to_hbm [thread:$0]  %s914, 4096, %s912, %s893, 128, 128, 8
        $region48: #{tpu_custom_call.1} parent=35 // pred_fallthru
          _
        // Predicated region
        $region49: #{tpu_custom_call.1} parent=35 // pred_check
          %p920 = pneg %p183
        $region50: #{tpu_custom_call.1} parent=35 // pred_check_branch
          %922 = sbr.rel (%p920) target = $region52
        $region51: #{tpu_custom_call.1} parent=35 // pred_region
          %s923 = smul.u32 32, %s32
          %s925 = ssub.s32 4096, 4096
          %926 = vsyncadd %s898, %s925
          %s927 = smul.addr %s31, 32
          %s928 = sadd.s32 %s923, %s927
          %s929 = smul.addr %s928, 128
          %s930 = scalar_lea.hbm %s5, %s929
          %s931 = sshll.u32 %s901, 4
          %s932 = int_to_ptr.vmem [resolvable:$true] %s931
          %937 = dma.vmem_to_hbm [thread:$0]  %s932, 4096, %s930, %s898, 128, 128, 8
        $region52: #{tpu_custom_call.1} parent=35 // pred_fallthru
          _
      $region36: #{tpu_custom_call.1} parent=5 // pred_fallthru
        _
      %p938 = scmp.le.s32.totalorder 2, %s22
      // Predicated region
      $region53: #{tpu_custom_call.1} parent=5 // pred_check
        %p939 = pneg %p938
      $region54: #{tpu_custom_call.1} parent=5 // pred_check_branch
        %941 = sbr.rel (%p939) target = $region56
      $region55: #{tpu_custom_call.1} parent=5 // pred_region
        %s942 = ssub.s32 %s22, 2
        // Predicated region
        $region57: #{tpu_custom_call.1} parent=55 // pred_check
          %p943 = pneg %p161
        $region58: #{tpu_custom_call.1} parent=55 // pred_check_branch
          %945 = sbr.rel (%p943) target = $region60
        $region59: #{tpu_custom_call.1} parent=55 // pred_region
          %s946 = sand.u32 %s146, 1
          %s947 = scalar_lea.sflag [#allocation4], %s946
          %s948 = sand.u32 %s146, 1
          %s949 = smul.addr %s948, 256
          %s950 = scalar_lea.vmem [#allocation7], %s949
          %951 = dma.done %s947, 4096
        $region60: #{tpu_custom_call.1} parent=55 // pred_fallthru
          _
        // Predicated region
        $region61: #{tpu_custom_call.1} parent=55 // pred_check
          %p952 = pneg %p189
        $region62: #{tpu_custom_call.1} parent=55 // pred_check_branch
          %954 = sbr.rel (%p952) target = $region64
        $region63: #{tpu_custom_call.1} parent=55 // pred_region
          %s955 = sand.u32 %s174, 1
          %s956 = scalar_lea.sflag [#allocation9], %s955
          %s957 = sand.u32 %s174, 1
          %s958 = smul.addr %s957, 256
          %s959 = scalar_lea.vmem [#allocation8], %s958
          %960 = dma.done %s956, 4096
        $region64: #{tpu_custom_call.1} parent=55 // pred_fallthru
          _
      $region56: #{tpu_custom_call.1} parent=5 // pred_fallthru
        _
    $region6: #{tpu_custom_call.1} parent=1 // loop_footer
      %s26 = sadd.s32 1, %s22
    $region7: #{tpu_custom_call.1} parent=1 // loop_footer_branch
      %21 = sbr.rel target = $region3
    $region8: #{tpu_custom_call.1} parent=1 // loop_exit
      _
    %961 = vsyncpa [#allocation3], 1
    %s962 = scalar_lea.sflag [#allocation3], 1
    %963 = vsyncpa %s962, 1
    %964 = vsyncpa [#allocation6], 1
    %965 = vsyncpa [#allocation4], 1
    %s966 = scalar_lea.sflag [#allocation4], 1
    %967 = vsyncpa %s966, 1
    %968 = vsyncpa [#allocation9], 1
    %s969 = scalar_lea.sflag [#allocation9], 1
    %970 = vsyncpa %s969, 1

</llo_original>
